<compile_context>
chip_gen: v6e
topology: v6e:2x2x1
jax: 0.10.0
libtpu: 0.0.40
codegen_flags: <defaults>
</compile_context>

<pallas_src>
import functools

import jax
import jax.numpy as jnp
from jax.experimental import pallas as pl
from jax.experimental.pallas import tpu as pltpu

DEGREE = 2  # matches Polynomial(input_dim, output_dim, degree=2)

_LANE = 128
_SUBLANE = 8
_MAX_TILE_B = 512  # rows per batch tile (sweep-friendly; tiny VMEM footprint)


def _round_up(a: int, m: int) -> int:
    return ((a + m - 1) // m) * m


def _polynomial_kernel(x_ref, wt_ref, b_ref, o_ref, *, degree: int):
    # x_ref : [TILE_B, input_dim]          (VMEM)
    # wt_ref: [input_dim*degree, N_pad]    (VMEM)  -- W transposed, col-padded
    # b_ref : [1, N_pad]                   (VMEM)
    # o_ref : [TILE_B, N_pad]              (VMEM)
    x = x_ref[...]

    # Build polynomial features once; powers computed incrementally (O(degree)
    # VPU multiplies instead of O(degree^2)).
    feats = [x]
    xd = x
    for _ in range(degree - 1):
        xd = xd * x
        feats.append(xd)
    poly = jnp.concatenate(feats, axis=-1)  # [TILE_B, poly_dim]

    # Single fused MXU contraction over the whole poly_dim, f32 accumulation,
    # accumulator seeded from the broadcast bias.
    acc = b_ref[...].astype(jnp.float32) + jnp.dot(
        poly, wt_ref[...], preferred_element_type=jnp.float32
    )
    o_ref[...] = acc.astype(o_ref.dtype)


def polynomial_forward(x, weight, bias, *, degree: int = DEGREE):
    """x: [B, input_dim], weight: [output_dim, poly_dim], bias: [output_dim]."""
    B, input_dim = x.shape
    output_dim, poly_dim = weight.shape
    assert poly_dim == input_dim * degree

    # ---- layout prep (wrapper-side glue) -----------------------------------
    # Lane-dense output: pad the N axis to a multiple of 128.
    n_pad = _round_up(output_dim, _LANE)
    wt = weight.T  # [poly_dim, output_dim]
    if n_pad != output_dim:
        wt = jnp.pad(wt, ((0, 0), (0, n_pad - output_dim)))
        bias_p = jnp.pad(bias, (0, n_pad - output_dim))
    else:
        bias_p = bias
    b2 = bias_p.reshape(1, n_pad)

    # Batch tiling: tile must be a multiple of 8 sublanes; pad the ragged tail.
    tile_b = min(_MAX_TILE_B, _round_up(B, _SUBLANE))
    b_total = _round_up(B, tile_b)
    if b_total != B:
        x_in = jnp.pad(x, ((0, b_total - B), (0, 0)))
    else:
        x_in = x
    grid = (b_total // tile_b,)

    kernel = functools.partial(_polynomial_kernel, degree=degree)

    out_padded = pl.pallas_call(
        kernel,
        out_shape=jax.ShapeDtypeStruct((b_total, n_pad), x.dtype),
        grid=grid,
        in_specs=[
            pl.BlockSpec((tile_b, input_dim), lambda i: (i, 0)),   # x tile
            pl.BlockSpec((poly_dim, n_pad), lambda i: (0, 0)),     # weight (resident)
            pl.BlockSpec((1, n_pad), lambda i: (0, 0)),            # bias (resident)
        ],
        out_specs=pl.BlockSpec((tile_b, n_pad), lambda i: (i, 0)),
        compiler_params=pltpu.CompilerParams(
            dimension_semantics=("parallel",),
            vmem_limit_bytes=32 * 1024 * 1024,  # safe on v5e/v6e/v7x
        ),
    )(x_in, wt, b2)

    # Slice away batch-tail and lane padding.
    return out_padded[:B, :output_dim]


def _reference(x, weight, bias, degree=DEGREE):
    feats = jnp.concatenate([x ** d for d in range(1, degree + 1)], axis=1)
    return feats @ weight.T + bias


if __name__ == "__main__":
    key = jax.random.PRNGKey(0)
    k_x, k_w, k_b = jax.random.split(key, 3)

    batch, input_dim, output_dim = 8, 16, 8
    poly_dim = input_dim * DEGREE

    x = jax.random.normal(k_x, (batch, input_dim), dtype=jnp.float32)
    # Deterministic parameter init (nn.Linear-like uniform fan-in scaling).
    bound = 1.0 / (poly_dim ** 0.5)
    weight = jax.random.uniform(k_w, (output_dim, poly_dim), jnp.float32, -bound, bound)
    bias = jax.random.uniform(k_b, (output_dim,), jnp.float32, -bound, bound)

    out = polynomial_forward(x, weight, bias)
    out = jax.block_until_ready(out)

    ref = _reference(x, weight, bias)
    assert out.shape == (batch, output_dim)
    assert jnp.allclose(out, ref, atol=1e-5, rtol=1e-5)

    print("KERNEL_OK")
</pallas_src>

<mosaic_0001>
module attributes {stable_mosaic.version = 11 : i64} {
  func.func @_polynomial_kernel(%arg0: i32, %arg1: memref<8x16xf32, #tpu.memory_space<vmem>>, %arg2: memref<32x128xf32, #tpu.memory_space<vmem>>, %arg3: memref<1x128xf32, #tpu.memory_space<vmem>>, %arg4: memref<8x128xf32, #tpu.memory_space<vmem>>) attributes {dimension_semantics = [#tpu.dimension_semantics<parallel>], iteration_bounds = array<i64: 1>, scalar_prefetch = 0 : i64, scratch_operands = 0 : i64, tpu.core_type = #tpu.core_type<tc>, window_params = [{transform_indices = @transform_0, window_bounds = array<i64: 8, 16>}, {pipeline_mode = #tpu.pipeline_mode<synchronous>, transform_indices = @transform_1, window_bounds = array<i64: 32, 128>}, {pipeline_mode = #tpu.pipeline_mode<synchronous>, transform_indices = @transform_2, window_bounds = array<i64: 1, 128>}, {transform_indices = @transform_3, window_bounds = array<i64: 8, 128>}]} {
    %c0 = arith.constant 0 : index
    %c0_0 = arith.constant 0 : index
    %0 = vector.load %arg1[%c0, %c0_0] : memref<8x16xf32, #tpu.memory_space<vmem>>, vector<8x16xf32>
    %1 = arith.mulf %0, %0 : vector<8x16xf32>
    %2 = tpu.concatenate %0, %1 in 1 : vector<8x16xf32>, vector<8x16xf32> -> vector<8x32xf32>
    %c0_1 = arith.constant 0 : index
    %c0_2 = arith.constant 0 : index
    %3 = vector.load %arg3[%c0_1, %c0_2] : memref<1x128xf32, #tpu.memory_space<vmem>>, vector<1x128xf32>
    %c0_3 = arith.constant 0 : index
    %c0_4 = arith.constant 0 : index
    %4 = vector.load %arg2[%c0_3, %c0_4] : memref<32x128xf32, #tpu.memory_space<vmem>>, vector<32x128xf32>
    %cst = arith.constant dense<0.000000e+00> : vector<8x128xf32>
    %5 = tpu.matmul %2, %4, %cst {dimension_numbers = #tpu.dot_dimension_numbers<[1], [0], [0], [1], [0, 0, 1, 1], [], []>} : vector<8x32xf32>, vector<32x128xf32>, vector<8x128xf32> -> vector<8x128xf32>
    %6 = vector.broadcast %3 : vector<1x128xf32> to vector<8x128xf32>
    %7 = arith.addf %6, %5 : vector<8x128xf32>
    %c0_5 = arith.constant 0 : index
    %c0_6 = arith.constant 0 : index
    %8 = vector.load %arg4[%c0_5, %c0_6] : memref<8x128xf32, #tpu.memory_space<vmem>>, vector<8x128xf32>
    tpu.vector_store %arg4[%c0_5, %c0_6], %7 {strides = array<i32>} : memref<8x128xf32, #tpu.memory_space<vmem>>, vector<8x128xf32>,
    return
  }
  func.func @transform_0(%arg0: i32) -> (i32, i32) {
    %c0_i32 = arith.constant 0 : i32
    %c0_i32_0 = arith.constant 0 : i32
    return %arg0, %c0_i32 : i32, i32
  }
  func.func @transform_1(%arg0: i32) -> (i32, i32) {
    %c0_i32 = arith.constant 0 : i32
    %c0_i32_0 = arith.constant 0 : i32
    %c0_i32_1 = arith.constant 0 : i32
    return %c0_i32, %c0_i32_0 : i32, i32
  }
  func.func @transform_2(%arg0: i32) -> (i32, i32) {
    %c0_i32 = arith.constant 0 : i32
    %c0_i32_0 = arith.constant 0 : i32
    %c0_i32_1 = arith.constant 0 : i32
    return %c0_i32, %c0_i32_0 : i32, i32
  }
  func.func @transform_3(%arg0: i32) -> (i32, i32) {
    %c0_i32 = arith.constant 0 : i32
    %c0_i32_0 = arith.constant 0 : i32
    return %arg0, %c0_i32 : i32, i32
  }
}

</mosaic_0001>

<llo_original>
// kernel: tpu_custom_call.1
$region0: #{tpu_custom_call.1}
  #allocation0 [shape = 'u32[]', space=smem, size = 0x4, offset = 0x4, fixed_abs, tag = 'smem constant byte address 0x4 - core index']
  #allocation1 [shape = 'u32[144,128]{1,0:T(1,128)}', space=vmem, size = 0x12000, scoped, tag = 'internal scratch']
  %s0 = inlined_call_operand.hbm [shape: f32[8,16], index: 0, kind: input, shape index: {}]
  %s1 = inlined_call_operand.hbm [shape: f32[32,128], index: 1, kind: input, shape index: {}]
  %s2 = inlined_call_operand.vmem [shape: f32[1,128], index: 2, kind: input, shape index: {}]
  %s3 = inlined_call_operand.hbm [shape: f32[8,128], index: 3, kind: output, shape index: {}]
  %s4 = sld [smem:[#allocation0]]
  $region30: #{tpu_custom_call.1} parent=0
    _
  %s6 = ssub.s32 1, %s4
  %s7 = scalar_select 0, %s6, %s4
  $region1: #{tpu_custom_call.1} parent=0
    #allocation2 [shape = 'u8[4096]{0}', space=vmem, size = 0x1000, scoped, tag = 'input window, operand 0, single buffered']
    #allocation3 [shape = 's32[1]{0}', space=sflag, size = 0x4, scoped, tag = 'scoped memory for tpu_custom_call.1']
    #allocation4 [shape = 's32[1]{0}', space=sflag, size = 0x4, scoped, tag = 'scoped memory for tpu_custom_call.1']
    #allocation5 [shape = 'u8[16384]{0}', space=vmem, size = 0x4000, scoped, tag = 'input window, operand 1, single buffered']
    #allocation6 [shape = 's32[1]{0}', space=sflag, size = 0x4, scoped, tag = 'scoped memory for tpu_custom_call.1']
    #allocation7 [shape = 'u8[4096]{0}', space=vmem, size = 0x1000, scoped, tag = 'output window, operand 0, single buffered']
    %8 = vsyncpa [#allocation3], 0
    %9 = vsyncpa [#allocation6], 0
    %10 = vsyncpa [#allocation4], 0
    // Predicated region
    $region2: #{tpu_custom_call.1} parent=1 // pred_check
      _
    $region3: #{tpu_custom_call.1} parent=1 // pred_check_branch
      %12 = sbr.rel (0) target = $region5
    $region4: #{tpu_custom_call.1} parent=1 // pred_region
      %s14 = ssub.s32 128, 128
      %15 = vsyncadd [#allocation3], %s14
      %s17 = sshll.u32 [#allocation2], 4
      %s18 = int_to_ptr.vmem [resolvable:$true] %s17
      %20 = dma.hbm_to_vmem [thread:$0]  %s0, 128, %s18, [#allocation3]
    $region5: #{tpu_custom_call.1} parent=1 // pred_fallthru
      _
    // Predicated region
    $region6: #{tpu_custom_call.1} parent=1 // pred_check
      _
    $region7: #{tpu_custom_call.1} parent=1 // pred_check_branch
      %22 = sbr.rel (0) target = $region9
    $region8: #{tpu_custom_call.1} parent=1 // pred_region
      %s24 = ssub.s32 512, 512
      %25 = vsyncadd [#allocation6], %s24
      %s26 = sshll.u32 [#allocation5], 4
      %s27 = int_to_ptr.vmem [resolvable:$true] %s26
      %32 = dma.hbm_to_vmem [thread:$0]  %s1, 512, %s27, [#allocation6], 128, 128, 8
    $region9: #{tpu_custom_call.1} parent=1 // pred_fallthru
      _
    // Predicated region
    $region10: #{tpu_custom_call.1} parent=1 // pred_check
      _
    $region11: #{tpu_custom_call.1} parent=1 // pred_check_branch
      %34 = sbr.rel (0) target = $region13
    $region12: #{tpu_custom_call.1} parent=1 // pred_region
      _
    $region13: #{tpu_custom_call.1} parent=1 // pred_fallthru
      _
    // Predicated region
    $region14: #{tpu_custom_call.1} parent=1 // pred_check
      _
    $region15: #{tpu_custom_call.1} parent=1 // pred_check_branch
      %36 = sbr.rel (0) target = $region17
    $region16: #{tpu_custom_call.1} parent=1 // pred_region
      %37 = dma.done [#allocation3], 128
    $region17: #{tpu_custom_call.1} parent=1 // pred_fallthru
      _
    // Predicated region
    $region18: #{tpu_custom_call.1} parent=1 // pred_check
      _
    $region19: #{tpu_custom_call.1} parent=1 // pred_check_branch
      %39 = sbr.rel (0) target = $region21
    $region20: #{tpu_custom_call.1} parent=1 // pred_region
      %40 = dma.done [#allocation6], 512
    $region21: #{tpu_custom_call.1} parent=1 // pred_fallthru
      _
    %v41 = vld [vmem:[#allocation2] sm:$0xff]
    %v42 = vmul.f32 %v41, %v41
    %44 = vrot.lane.b32.xlu0 %v42, 16
    %v45 = vpop.permute.xlu0 %44
    %vm47 = vcmask 130048
    %v48 = vsel %vm47, %v41, %v45
    %v49 = vld [vmem:[%s2] sm:$0x1]
    %v50 = vld [vmem:[#allocation5] sm:$0xff]
    %v51 = vld [vmem:[#allocation5 + $0x8] sm:$0xff]
    %v52 = vld [vmem:[#allocation5 + $0x10] sm:$0xff]
    %v53 = vld [vmem:[#allocation5 + $0x18] sm:$0xff]
    %vm54 = vcmask 261120
    %v56 = vsel %vm54, %v48, 0
    %58 = vmatprep.subr.mxu0 0.0
    %59 = vmatpush1.msra.mxu0 0.0
    %60 = vmatprep.subr.mxu0 0.0
    %61 = vmatpush1.msra.mxu0 0.0
    %62 = vmatprep.subr.mxu0 0.0
    %63 = vmatpush1.msra.mxu0 0.0
    %64 = vmatprep.subr.mxu0 0.0
    %65 = vmatpush1.msra.mxu0 0.0
    %66 = vmatprep.subr.mxu0 0.0
    %67 = vmatpush1.msra.mxu0 0.0
    %68 = vmatprep.subr.mxu0 0.0
    %69 = vmatpush1.msra.mxu0 0.0
    %70 = vmatprep.subr.mxu0 0.0
    %71 = vmatpush1.msra.mxu0 0.0
    %72 = vmatprep.subr.mxu0 0.0
    %73 = vmatpush1.msra.mxu0 0.0
    %74 = vmatprep.subr.mxu0 0.0
    %75 = vmatpush1.msra.mxu0 0.0
    %76 = vmatprep.subr.mxu0 0.0
    %77 = vmatpush1.msra.mxu0 0.0
    %78 = vmatprep.subr.mxu0 0.0
    %79 = vmatpush1.msra.mxu0 0.0
    %80 = vmatprep.subr.mxu0 0.0
    %81 = vmatpush1.msra.mxu0 0.0
    %82 = vmatprep.subr.mxu0 0.0
    %83 = vmatpush1.msra.mxu0 %v53
    %84 = vmatprep.subr.mxu0 0.0
    %85 = vmatpush1.msra.mxu0 %v52
    %86 = vmatprep.subr.mxu0 0.0
    %87 = vmatpush1.msra.mxu0 %v51
    %88 = vmatprep.subr.mxu0 0.0
    %89 = vmatpush1.msra.mxu0 %v50
    %90 = vmatprep.subr.mxu0 0.0
    %91 = vmatpush2.msra.mxu0 0.0
    %92 = vmatprep.subr.mxu0 0.0
    %93 = vmatpush2.msra.mxu0 0.0
    %94 = vmatprep.subr.mxu0 0.0
    %95 = vmatpush2.msra.mxu0 0.0
    %96 = vmatprep.subr.mxu0 0.0
    %97 = vmatpush2.msra.mxu0 0.0
    %98 = vmatprep.subr.mxu0 0.0
    %99 = vmatpush2.msra.mxu0 0.0
    %100 = vmatprep.subr.mxu0 0.0
    %101 = vmatpush2.msra.mxu0 0.0
    %102 = vmatprep.subr.mxu0 0.0
    %103 = vmatpush2.msra.mxu0 0.0
    %104 = vmatprep.subr.mxu0 0.0
    %105 = vmatpush2.msra.mxu0 0.0
    %106 = vmatprep.subr.mxu0 0.0
    %107 = vmatpush2.msra.mxu0 0.0
    %108 = vmatprep.subr.mxu0 0.0
    %109 = vmatpush2.msra.mxu0 0.0
    %110 = vmatprep.subr.mxu0 0.0
    %111 = vmatpush2.msra.mxu0 0.0
    %112 = vmatprep.subr.mxu0 0.0
    %113 = vmatpush2.msra.mxu0 0.0
    %114 = vmatprep.subr.mxu0 0.0
    %115 = vmatpush2.msra.mxu0 0.0
    %116 = vmatprep.subr.mxu0 0.0
    %117 = vmatpush2.msra.mxu0 0.0
    %118 = vmatprep.subr.mxu0 0.0
    %119 = vmatpush2.msra.mxu0 0.0
    %120 = vmatprep.subr.mxu0 0.0
    %121 = vmatpush2.msra.mxu0 0.0
    %122 = vmatprep.mubr.f32.mxu0 0.0
    %123 = vmatmul.mubr.f32.gmra.mxu0 %v56
    %v124 = vpop.f32.mrf.mxu0
    %v125 = vadd.f32 0.0, %v124
    %v126 = vpop.f32.mrf.mxu0
    %127 = vdwg.mxu0
    %v129 = vlaneseq
    %v130 = vshrl.u32 %v129, 7
    %v131 = vsub.s32 0, %v130
    %v132 = vrot.slane %v49, %v131
    %v134 = vadd.f32 %v132, %v125
    %135 = vst [vmem:[#allocation7] sm:$0xff] %v134
    // Predicated region
    $region22: #{tpu_custom_call.1} parent=1 // pred_check
      _
    $region23: #{tpu_custom_call.1} parent=1 // pred_check_branch
      %137 = sbr.rel (0) target = $region25
    $region24: #{tpu_custom_call.1} parent=1 // pred_region
      %s139 = ssub.s32 128, 128
      %140 = vsyncadd [#allocation4], %s139
      %s142 = sshll.u32 [#allocation7], 4
      %s143 = int_to_ptr.vmem [resolvable:$true] %s142
      %145 = dma.vmem_to_hbm [thread:$0]  %s143, 128, %s3, [#allocation4]
    $region25: #{tpu_custom_call.1} parent=1 // pred_fallthru
      _
    // Predicated region
    $region26: #{tpu_custom_call.1} parent=1 // pred_check
      _
    $region27: #{tpu_custom_call.1} parent=1 // pred_check_branch
      %147 = sbr.rel (0) target = $region29
    $region28: #{tpu_custom_call.1} parent=1 // pred_region
      %148 = dma.done [#allocation4], 128
    $region29: #{tpu_custom_call.1} parent=1 // pred_fallthru
      _
    %149 = vsyncpa [#allocation3], 1
    %150 = vsyncpa [#allocation6], 1
    %151 = vsyncpa [#allocation4], 1

</llo_original>
